<compile_context>
chip_gen: v5e
topology: v5e:2x2
jax: 0.10.0
libtpu: 0.0.40
codegen_flags: <defaults>
</compile_context>

<pallas_src>
import jax
import jax.numpy as jnp
from jax.experimental import pallas as pl
from jax.experimental.pallas import tpu as pltpu


# nn.LayerNorm default eps; HF AlbertMLMHead constructs nn.LayerNorm(embedding_size)
# with the default.  (Some ports use config.layer_norm_eps = 1e-12 — adjust here.)
LAYER_NORM_EPS = 1e-5


def _gelu_new(x):
    # ALBERT default hidden_act = "gelu_new" (tanh approximation).
    # TODO(synk): other ACT2FN entries (relu, gelu, swish, ...) not implemented.
    return 0.5 * x * (1.0 + jnp.tanh(0.7978845608028654 * (x + 0.044715 * x * x * x)))


def _round_up(x, m):
    return ((x + m - 1) // m) * m


def _cdiv(a, b):
    return (a + b - 1) // b


# ---------------------------------------------------------------------------
# Pass 1: dense -> gelu_new -> LayerNorm   (one row tile per grid step)
# ---------------------------------------------------------------------------
def dense_ln_kernel(x_ref, wd_ref, bd_ref, gamma_ref, beta_ref, h_ref):
    # x_ref: (tm1, H)   wd_ref: (H, E)   bd/gamma/beta: (1, E)   h_ref: (tm1, E)
    h = jnp.dot(x_ref[...], wd_ref[...], preferred_element_type=jnp.float32)
    h = h + bd_ref[...].astype(jnp.float32)
    h = _gelu_new(h)
    mean = jnp.mean(h, axis=-1, keepdims=True)
    centered = h - mean
    var = jnp.mean(centered * centered, axis=-1, keepdims=True)
    h = centered * jax.lax.rsqrt(var + LAYER_NORM_EPS)
    h = h * gamma_ref[...].astype(jnp.float32) + beta_ref[...].astype(jnp.float32)
    h_ref[...] = h.astype(h_ref.dtype)


# ---------------------------------------------------------------------------
# Pass 2: decoder matmul.  Grid = (vocab tiles OUTER, row tiles inner) so each
# decoder weight slab is read from HBM exactly once.
# ---------------------------------------------------------------------------
def decoder_kernel(h_ref, wdec_ref, bdec_ref, o_ref):
    # h_ref: (tm, E)   wdec_ref: (E, tn)   bdec_ref: (1, tn)   o_ref: (tm, tn)
    out = jnp.dot(h_ref[...], wdec_ref[...], preferred_element_type=jnp.float32)
    out = out + bdec_ref[...].astype(jnp.float32)
    o_ref[...] = out.astype(o_ref.dtype)


@jax.jit
def albert_mlm_head(hidden_states, w_dense, b_dense, gamma, beta, w_dec, b_dec):
    B, S, H = hidden_states.shape
    E = w_dense.shape[1]
    V = w_dec.shape[1]
    M = B * S

    out_dtype = hidden_states.dtype
    h_dtype = w_dec.dtype  # bf16 weights -> bf16 intermediate (halves decoder BW)

    x_item = jnp.dtype(hidden_states.dtype).itemsize
    wd_item = jnp.dtype(w_dense.dtype).itemsize
    wdec_item = jnp.dtype(w_dec.dtype).itemsize
    h_item = jnp.dtype(h_dtype).itemsize
    o_item = jnp.dtype(out_dtype).itemsize

    # ---- tile sizing -------------------------------------------------------
    # dtype-aware row packing: 8 rows for f32, 16 for bf16, 32 for int8/fp8.
    pack = 8 * max(1, 4 // x_item)
    Mp = _round_up(M, pack)          # rows padded only to packing granularity
    v128 = _round_up(V, 128)         # vocab padded only to lane width

    tm1 = min(512, Mp)               # pass-1 row tile
    tm = min(512, Mp)                # pass-2 row tile
    tn = min(4096, v128)             # pass-2 vocab tile (lane-dense, big)

    n_row1 = _cdiv(Mp, tm1)
    n_row = _cdiv(Mp, tm)
    n_voc = _cdiv(v128, tn)

    # ---- padding (wrapper-side, sliced back at the end) --------------------
    x2d = hidden_states.reshape(M, H)
    if Mp != M:
        x2d = jnp.pad(x2d, ((0, Mp - M), (0, 0)))
    wdec_p = w_dec if v128 == V else jnp.pad(w_dec, ((0, 0), (0, v128 - V)))
    bdec_p = b_dec if v128 == V else jnp.pad(b_dec, ((0, v128 - V),))

    bd = b_dense.reshape(1, E)
    g = gamma.reshape(1, E)
    be = beta.reshape(1, E)
    bdec2 = bdec_p.reshape(1, v128)

    # ---- VMEM budgets (tile math + slack, clamped so v7x's 64 MiB is safe) --
    def _vmem_limit(need_bytes):
        return int(min(48 * 2 ** 20, max(32 * 2 ** 20, need_bytes + 8 * 2 ** 20)))

    vmem1 = 2 * (tm1 * H * x_item + H * E * wd_item + 3 * E * 4 + tm1 * E * h_item)
    vmem2 = 2 * (tm * E * h_item + E * tn * wdec_item + tn * 4 + tm * tn * o_item)

    # ---- cost estimates (bytes as actually streamed) ------------------------
    cost1 = pl.CostEstimate(
        flops=2 * M * H * E,
        transcendentals=M * E,
        bytes_accessed=(Mp * H * x_item + H * E * wd_item + 3 * E * 4
                        + Mp * E * h_item),
    )
    cost2 = pl.CostEstimate(
        flops=2 * M * E * V,
        transcendentals=0,
        bytes_accessed=(n_voc * Mp * E * h_item          # h re-read per vocab tile
                        + E * v128 * wdec_item           # W_dec streamed once
                        + v128 * 4
                        + Mp * v128 * o_item),           # logits written once
    )

    # ---- pass 1: h = LayerNorm(gelu_new(x @ W_dense + b_dense)) ------------
    h = pl.pallas_call(
        dense_ln_kernel,
        out_shape=jax.ShapeDtypeStruct((Mp, E), h_dtype),
        grid_spec=pltpu.PrefetchScalarGridSpec(
            num_scalar_prefetch=0,
            grid=(n_row1,),
            in_specs=[
                pl.BlockSpec((tm1, H), lambda i: (i, 0)),   # x row tile
                pl.BlockSpec((H, E), lambda i: (0, 0)),     # dense weight (full)
                pl.BlockSpec((1, E), lambda i: (0, 0)),     # dense bias
                pl.BlockSpec((1, E), lambda i: (0, 0)),     # LN gamma
                pl.BlockSpec((1, E), lambda i: (0, 0)),     # LN beta
            ],
            out_specs=pl.BlockSpec((tm1, E), lambda i: (i, 0)),
        ),
        compiler_params=pltpu.CompilerParams(
            dimension_semantics=("parallel",),
            vmem_limit_bytes=_vmem_limit(vmem1),
        ),
        cost_estimate=cost1,
    )(x2d, w_dense, bd, g, be)

    # ---- pass 2: logits = h @ W_dec + b_dec  (vocab outer, rows inner) ------
    out2d = pl.pallas_call(
        decoder_kernel,
        out_shape=jax.ShapeDtypeStruct((Mp, v128), out_dtype),
        grid_spec=pltpu.PrefetchScalarGridSpec(
            num_scalar_prefetch=0,
            grid=(n_voc, n_row),
            in_specs=[
                pl.BlockSpec((tm, E), lambda j, i: (i, 0)),   # h row tile
                pl.BlockSpec((E, tn), lambda j, i: (0, j)),   # W_dec slab (per outer j)
                pl.BlockSpec((1, tn), lambda j, i: (0, j)),   # decoder bias slab
            ],
            out_specs=pl.BlockSpec((tm, tn), lambda j, i: (i, j)),
        ),
        compiler_params=pltpu.CompilerParams(
            dimension_semantics=("parallel", "arbitrary"),
            vmem_limit_bytes=_vmem_limit(vmem2),
        ),
        cost_estimate=cost2,
    )(h, wdec_p, bdec2)

    return out2d[:M, :V].reshape(B, S, V)


def _reference(hidden_states, w_dense, b_dense, gamma, beta, w_dec, b_dec):
    h = hidden_states @ w_dense + b_dense
    h = _gelu_new(h)
    mean = jnp.mean(h, axis=-1, keepdims=True)
    var = jnp.mean((h - mean) ** 2, axis=-1, keepdims=True)
    h = (h - mean) / jnp.sqrt(var + LAYER_NORM_EPS)
    h = h * gamma + beta
    return h @ w_dec + b_dec


if __name__ == "__main__":
    # Small ALBERT-like config
    batch, seq = 2, 8
    hidden_size = 32       # config.hidden_size
    embedding_size = 16    # config.embedding_size
    vocab_size = 64        # config.vocab_size

    key = jax.random.PRNGKey(0)
    k_x, k_wd, k_bd, k_g, k_b, k_wdec = jax.random.split(key, 6)

    hidden_states = jax.random.normal(k_x, (batch, seq, hidden_size), jnp.float32)

    # nn.Linear(hidden_size, embedding_size): torch weight is (E, H); store (H, E)
    w_dense = jax.random.normal(k_wd, (hidden_size, embedding_size), jnp.float32) * 0.05
    b_dense = jax.random.normal(k_bd, (embedding_size,), jnp.float32) * 0.05
    # nn.LayerNorm(embedding_size)
    gamma = 1.0 + 0.05 * jax.random.normal(k_g, (embedding_size,), jnp.float32)
    beta = 0.05 * jax.random.normal(k_b, (embedding_size,), jnp.float32)
    # nn.Linear(embedding_size, vocab_size): stored as (E, V); bias tied to self.bias
    w_dec = jax.random.normal(k_wdec, (embedding_size, vocab_size), jnp.float32) * 0.05
    b_dec = jnp.zeros((vocab_size,), jnp.float32)  # self.bias = zeros(vocab_size)

    out = albert_mlm_head(hidden_states, w_dense, b_dense, gamma, beta, w_dec, b_dec)
    out = jax.block_until_ready(out)

    ref = _reference(hidden_states, w_dense, b_dense, gamma, beta, w_dec, b_dec)
    assert out.shape == (batch, seq, vocab_size)
    assert jnp.allclose(out, ref, atol=1e-4, rtol=1e-4), "mismatch vs reference"

    print("KERNEL_OK")
</pallas_src>

<mosaic_0001>
module attributes {stable_mosaic.version = 11 : i64} {
  func.func @dense_ln_kernel(%arg0: i32, %arg1: memref<16x32xf32, #tpu.memory_space<vmem>>, %arg2: memref<32x16xf32, #tpu.memory_space<vmem>>, %arg3: memref<1x16xf32, #tpu.memory_space<vmem>>, %arg4: memref<1x16xf32, #tpu.memory_space<vmem>>, %arg5: memref<1x16xf32, #tpu.memory_space<vmem>>, %arg6: memref<16x16xf32, #tpu.memory_space<vmem>>) attributes {dimension_semantics = [#tpu.dimension_semantics<parallel>], iteration_bounds = array<i64: 1>, scalar_prefetch = 0 : i64, scratch_operands = 0 : i64, tpu.core_type = #tpu.core_type<tc>, window_params = [{transform_indices = @transform_0, window_bounds = array<i64: 16, 32>}, {pipeline_mode = #tpu.pipeline_mode<synchronous>, transform_indices = @transform_1, window_bounds = array<i64: 32, 16>}, {pipeline_mode = #tpu.pipeline_mode<synchronous>, transform_indices = @transform_2, window_bounds = array<i64: 1, 16>}, {pipeline_mode = #tpu.pipeline_mode<synchronous>, transform_indices = @transform_3, window_bounds = array<i64: 1, 16>}, {pipeline_mode = #tpu.pipeline_mode<synchronous>, transform_indices = @transform_4, window_bounds = array<i64: 1, 16>}, {transform_indices = @transform_5, window_bounds = array<i64: 16, 16>}]} {
    %c0 = arith.constant 0 : index
    %c0_0 = arith.constant 0 : index
    %0 = vector.load %arg1[%c0, %c0_0] : memref<16x32xf32, #tpu.memory_space<vmem>>, vector<16x32xf32>
    %c0_1 = arith.constant 0 : index
    %c0_2 = arith.constant 0 : index
    %1 = vector.load %arg2[%c0_1, %c0_2] : memref<32x16xf32, #tpu.memory_space<vmem>>, vector<32x16xf32>
    %cst = arith.constant dense<0.000000e+00> : vector<16x16xf32>
    %2 = tpu.matmul %0, %1, %cst {dimension_numbers = #tpu.dot_dimension_numbers<[1], [0], [0], [1], [0, 0, 1, 1], [], []>} : vector<16x32xf32>, vector<32x16xf32>, vector<16x16xf32> -> vector<16x16xf32>
    %c0_3 = arith.constant 0 : index
    %c0_4 = arith.constant 0 : index
    %3 = vector.load %arg3[%c0_3, %c0_4] : memref<1x16xf32, #tpu.memory_space<vmem>>, vector<1x16xf32>
    %4 = vector.broadcast %3 : vector<1x16xf32> to vector<16x16xf32>
    %5 = arith.addf %2, %4 : vector<16x16xf32>
    %cst_5 = arith.constant 5.000000e-01 : f32
    %6 = vector.broadcast %cst_5 : f32 to vector<16x16xf32>
    %7 = arith.mulf %6, %5 : vector<16x16xf32>
    %cst_6 = arith.constant 4.471500e-02 : f32
    %8 = vector.broadcast %cst_6 : f32 to vector<16x16xf32>
    %9 = arith.mulf %8, %5 : vector<16x16xf32>
    %10 = arith.mulf %9, %5 : vector<16x16xf32>
    %11 = arith.mulf %10, %5 : vector<16x16xf32>
    %12 = arith.addf %5, %11 : vector<16x16xf32>
    %cst_7 = arith.constant 0.797884583 : f32
    %13 = vector.broadcast %cst_7 : f32 to vector<16x16xf32>
    %14 = arith.mulf %13, %12 : vector<16x16xf32>
    %15 = math.tanh %14 : vector<16x16xf32>
    %cst_8 = arith.constant 1.000000e+00 : f32
    %16 = vector.broadcast %cst_8 : f32 to vector<16x16xf32>
    %17 = arith.addf %16, %15 : vector<16x16xf32>
    %18 = arith.mulf %7, %17 : vector<16x16xf32>
    %cst_9 = arith.constant dense<0.000000e+00> : vector<16xf32>
    %19 = vector.multi_reduction <add>, %18, %cst_9 [1] : vector<16x16xf32> to vector<16xf32>
    %20 = vector.shape_cast %19 : vector<16xf32> to vector<16x1xf32>
    %cst_10 = arith.constant 1.600000e+01 : f32
    %21 = vector.broadcast %cst_10 : f32 to vector<16x1xf32>
    %22 = arith.divf %20, %21 : vector<16x1xf32>
    %23 = vector.broadcast %22 : vector<16x1xf32> to vector<16x16xf32>
    %24 = arith.subf %18, %23 : vector<16x16xf32>
    %25 = arith.mulf %24, %24 : vector<16x16xf32>
    %cst_11 = arith.constant dense<0.000000e+00> : vector<16xf32>
    %26 = vector.multi_reduction <add>, %25, %cst_11 [1] : vector<16x16xf32> to vector<16xf32>
    %27 = vector.shape_cast %26 : vector<16xf32> to vector<16x1xf32>
    %cst_12 = arith.constant 1.600000e+01 : f32
    %28 = vector.broadcast %cst_12 : f32 to vector<16x1xf32>
    %29 = arith.divf %27, %28 : vector<16x1xf32>
    %cst_13 = arith.constant 9.99999974E-6 : f32
    %30 = vector.broadcast %cst_13 : f32 to vector<16x1xf32>
    %31 = arith.addf %29, %30 : vector<16x1xf32>
    %32 = math.rsqrt %31 : vector<16x1xf32>
    %33 = vector.broadcast %32 : vector<16x1xf32> to vector<16x16xf32>
    %34 = arith.mulf %24, %33 : vector<16x16xf32>
    %c0_14 = arith.constant 0 : index
    %c0_15 = arith.constant 0 : index
    %35 = vector.load %arg4[%c0_14, %c0_15] : memref<1x16xf32, #tpu.memory_space<vmem>>, vector<1x16xf32>
    %36 = vector.broadcast %35 : vector<1x16xf32> to vector<16x16xf32>
    %37 = arith.mulf %34, %36 : vector<16x16xf32>
    %c0_16 = arith.constant 0 : index
    %c0_17 = arith.constant 0 : index
    %38 = vector.load %arg5[%c0_16, %c0_17] : memref<1x16xf32, #tpu.memory_space<vmem>>, vector<1x16xf32>
    %39 = vector.broadcast %38 : vector<1x16xf32> to vector<16x16xf32>
    %40 = arith.addf %37, %39 : vector<16x16xf32>
    %c0_18 = arith.constant 0 : index
    %c0_19 = arith.constant 0 : index
    %41 = vector.load %arg6[%c0_18, %c0_19] : memref<16x16xf32, #tpu.memory_space<vmem>>, vector<16x16xf32>
    tpu.vector_store %arg6[%c0_18, %c0_19], %40 {strides = array<i32>} : memref<16x16xf32, #tpu.memory_space<vmem>>, vector<16x16xf32>,
    return
  }
  func.func @transform_0(%arg0: i32) -> (i32, i32) {
    %c0_i32 = arith.constant 0 : i32
    %c0_i32_0 = arith.constant 0 : i32
    return %arg0, %c0_i32 : i32, i32
  }
  func.func @transform_1(%arg0: i32) -> (i32, i32) {
    %c0_i32 = arith.constant 0 : i32
    %c0_i32_0 = arith.constant 0 : i32
    %c0_i32_1 = arith.constant 0 : i32
    return %c0_i32, %c0_i32_0 : i32, i32
  }
  func.func @transform_2(%arg0: i32) -> (i32, i32) {
    %c0_i32 = arith.constant 0 : i32
    %c0_i32_0 = arith.constant 0 : i32
    %c0_i32_1 = arith.constant 0 : i32
    return %c0_i32, %c0_i32_0 : i32, i32
  }
  func.func @transform_3(%arg0: i32) -> (i32, i32) {
    %c0_i32 = arith.constant 0 : i32
    %c0_i32_0 = arith.constant 0 : i32
    %c0_i32_1 = arith.constant 0 : i32
    return %c0_i32, %c0_i32_0 : i32, i32
  }
  func.func @transform_4(%arg0: i32) -> (i32, i32) {
    %c0_i32 = arith.constant 0 : i32
    %c0_i32_0 = arith.constant 0 : i32
    %c0_i32_1 = arith.constant 0 : i32
    return %c0_i32, %c0_i32_0 : i32, i32
  }
  func.func @transform_5(%arg0: i32) -> (i32, i32) {
    %c0_i32 = arith.constant 0 : i32
    %c0_i32_0 = arith.constant 0 : i32
    return %arg0, %c0_i32 : i32, i32
  }
}

module attributes {stable_mosaic.version = 11 : i64} {
  func.func @decoder_kernel(%arg0: i32, %arg1: i32, %arg2: memref<16x16xf32, #tpu.memory_space<vmem>>, %arg3: memref<16x128xf32, #tpu.memory_space<vmem>>, %arg4: memref<1x128xf32, #tpu.memory_space<vmem>>, %arg5: memref<16x128xf32, #tpu.memory_space<vmem>>) attributes {dimension_semantics = [#tpu.dimension_semantics<parallel>, #tpu.dimension_semantics<arbitrary>], iteration_bounds = array<i64: 1, 1>, scalar_prefetch = 0 : i64, scratch_operands = 0 : i64, tpu.core_type = #tpu.core_type<tc>, window_params = [{transform_indices = @transform_0, window_bounds = array<i64: 16, 16>}, {transform_indices = @transform_1, window_bounds = array<i64: 16, 128>}, {transform_indices = @transform_2, window_bounds = array<i64: 1, 128>}, {transform_indices = @transform_3, window_bounds = array<i64: 16, 128>}]} {
    %c0 = arith.constant 0 : index
    %c0_0 = arith.constant 0 : index
    %0 = vector.load %arg2[%c0, %c0_0] : memref<16x16xf32, #tpu.memory_space<vmem>>, vector<16x16xf32>
    %c0_1 = arith.constant 0 : index
    %c0_2 = arith.constant 0 : index
    %1 = vector.load %arg3[%c0_1, %c0_2] : memref<16x128xf32, #tpu.memory_space<vmem>>, vector<16x128xf32>
    %cst = arith.constant dense<0.000000e+00> : vector<16x128xf32>
    %2 = tpu.matmul %0, %1, %cst {dimension_numbers = #tpu.dot_dimension_numbers<[1], [0], [0], [1], [0, 0, 1, 1], [], []>} : vector<16x16xf32>, vector<16x128xf32>, vector<16x128xf32> -> vector<16x128xf32>
    %c0_3 = arith.constant 0 : index
    %c0_4 = arith.constant 0 : index
    %3 = vector.load %arg4[%c0_3, %c0_4] : memref<1x128xf32, #tpu.memory_space<vmem>>, vector<1x128xf32>
    %4 = vector.broadcast %3 : vector<1x128xf32> to vector<16x128xf32>
    %5 = arith.addf %2, %4 : vector<16x128xf32>
    %c0_5 = arith.constant 0 : index
    %c0_6 = arith.constant 0 : index
    %6 = vector.load %arg5[%c0_5, %c0_6] : memref<16x128xf32, #tpu.memory_space<vmem>>, vector<16x128xf32>
    tpu.vector_store %arg5[%c0_5, %c0_6], %5 {strides = array<i32>} : memref<16x128xf32, #tpu.memory_space<vmem>>, vector<16x128xf32>,
    return
  }
  func.func @transform_0(%arg0: i32, %arg1: i32) -> (i32, i32) {
    %c0_i32 = arith.constant 0 : i32
    %c0_i32_0 = arith.constant 0 : i32
    return %arg1, %c0_i32 : i32, i32
  }
  func.func @transform_1(%arg0: i32, %arg1: i32) -> (i32, i32) {
    %c0_i32 = arith.constant 0 : i32
    %c0_i32_0 = arith.constant 0 : i32
    return %c0_i32, %arg0 : i32, i32
  }
  func.func @transform_2(%arg0: i32, %arg1: i32) -> (i32, i32) {
    %c0_i32 = arith.constant 0 : i32
    %c0_i32_0 = arith.constant 0 : i32
    return %c0_i32, %arg0 : i32, i32
  }
  func.func @transform_3(%arg0: i32, %arg1: i32) -> (i32, i32) {
    %c0_i32 = arith.constant 0 : i32
    return %arg1, %arg0 : i32, i32
  }
}

</mosaic_0001>

<llo_original>
// kernel: albert_mlm_head.3
$region0: #{albert_mlm_head.3}
  #allocation0 [shape = 'u32[]', space=smem, size = 0x4, offset = 0x4, fixed_abs, tag = 'smem constant byte address 0x4 - core index']
  #allocation1 [shape = 'u32[72,128]{1,0:T(1,128)}', space=vmem, size = 0x9000, scoped, tag = 'internal scratch']
  %s0 = inlined_call_operand.vmem [shape: f32[16,16], index: 0, kind: input, shape index: {}]
  %s1 = inlined_call_operand.vmem [shape: f32[16,128], index: 1, kind: input, shape index: {}]
  %s2 = inlined_call_operand.vmem [shape: f32[1,128], index: 2, kind: input, shape index: {}]
  %s3 = inlined_call_operand.vmem [shape: f32[16,128], index: 3, kind: output, shape index: {}]
  %s4 = sld [smem:[#allocation0]]
  $region22: #{albert_mlm_head.3} parent=0
    _
  %s6 = ssub.s32 1, %s4
  %s7 = scalar_select 0, %s6, %s4
  // Predicated region
  $region2: #{albert_mlm_head.3} parent=0 // pred_check
    _
  $region3: #{albert_mlm_head.3} parent=0 // pred_check_branch
    %9 = sbr.rel (0) target = $region5
  $region4: #{albert_mlm_head.3} parent=0 // pred_region
    _
  $region5: #{albert_mlm_head.3} parent=0 // pred_fallthru
    _
  // Predicated region
  $region6: #{albert_mlm_head.3} parent=0 // pred_check
    _
  $region7: #{albert_mlm_head.3} parent=0 // pred_check_branch
    %11 = sbr.rel (0) target = $region9
  $region8: #{albert_mlm_head.3} parent=0 // pred_region
    _
  $region9: #{albert_mlm_head.3} parent=0 // pred_fallthru
    _
  // Predicated region
  $region10: #{albert_mlm_head.3} parent=0 // pred_check
    _
  $region11: #{albert_mlm_head.3} parent=0 // pred_check_branch
    %13 = sbr.rel (0) target = $region13
  $region12: #{albert_mlm_head.3} parent=0 // pred_region
    _
  $region13: #{albert_mlm_head.3} parent=0 // pred_fallthru
    _
  %v14 = vld [vmem:[%s0] sm:$0xff]
  %v15 = vld [vmem:[%s0 + $0x8] sm:$0xff]
  %v16 = vld [vmem:[%s1] sm:$0xff]
  %v17 = vld [vmem:[%s1 + $0x8] sm:$0xff]
  %v18 = vld [vmem:[%s2] sm:$0x1]
  %v20 = vperm.slane %v18, 0
  %vm22 = vcmask 130048
  %v24 = vsel %vm22, %v14, 0
  %v27 = vsel %vm22, %v15, 0
  %29 = vmatpush.msra.mxu0 0.0
  %30 = vmatpush.msra.mxu0 0.0
  %31 = vmatpush.msra.mxu0 0.0
  %32 = vmatpush.msra.mxu0 0.0
  %33 = vmatpush.msra.mxu0 0.0
  %34 = vmatpush.msra.mxu0 0.0
  %35 = vmatpush.msra.mxu0 0.0
  %36 = vmatpush.msra.mxu0 0.0
  %37 = vmatpush.msra.mxu0 0.0
  %38 = vmatpush.msra.mxu0 0.0
  %39 = vmatpush.msra.mxu0 0.0
  %40 = vmatpush.msra.mxu0 0.0
  %41 = vmatpush.msra.mxu0 0.0
  %42 = vmatpush.msra.mxu0 0.0
  %43 = vmatpush.msra.mxu0 %v17
  %44 = vmatpush.msra.mxu0 %v16
  %45 = vmatmul.f32.gmra.mxu0 %v24
  %v46 = vpop.f32.mrf.mxu0
  %v47 = vadd.f32 %v20, %v46
  %48 = vmatmul.f32.gmra.mxu0 %v27
  %v49 = vpop.f32.mrf.mxu0
  %v50 = vadd.f32 %v20, %v49
  %51 = vdwg.mxu0
  %52 = vst [vmem:[%s3] sm:$0xff] %v47
  %53 = vst [vmem:[%s3 + $0x8] sm:$0xff] %v50
  // Predicated region
  $region14: #{albert_mlm_head.3} parent=0 // pred_check
    _
  $region15: #{albert_mlm_head.3} parent=0 // pred_check_branch
    %55 = sbr.rel (0) target = $region17
  $region16: #{albert_mlm_head.3} parent=0 // pred_region
    _
  $region17: #{albert_mlm_head.3} parent=0 // pred_fallthru
    _
  // Predicated region
  $region18: #{albert_mlm_head.3} parent=0 // pred_check
    _
  $region19: #{albert_mlm_head.3} parent=0 // pred_check_branch
    %57 = sbr.rel (0) target = $region21
  $region20: #{albert_mlm_head.3} parent=0 // pred_region
    _
  $region21: #{albert_mlm_head.3} parent=0 // pred_fallthru
    _

// kernel: albert_mlm_head.2
$region0: #{albert_mlm_head.2}
  #allocation0 [shape = 'u32[]', space=smem, size = 0x4, offset = 0x4, fixed_abs, tag = 'smem constant byte address 0x4 - core index']
  #allocation1 [shape = 'u32[72,128]{1,0:T(1,128)}', space=vmem, size = 0x9000, scoped, tag = 'internal scratch']
  %s0 = inlined_call_operand.vmem [shape: f32[16,32], index: 0, kind: input, shape index: {}]
  %s1 = inlined_call_operand.vmem [shape: f32[32,16], index: 1, kind: input, shape index: {}]
  %s2 = inlined_call_operand.vmem [shape: f32[1,16], index: 2, kind: input, shape index: {}]
  %s3 = inlined_call_operand.vmem [shape: f32[1,16], index: 3, kind: input, shape index: {}]
  %s4 = inlined_call_operand.vmem [shape: f32[1,16], index: 4, kind: input, shape index: {}]
  %s5 = inlined_call_operand.vmem [shape: f32[16,16], index: 5, kind: output, shape index: {}]
  %s6 = sld [smem:[#allocation0]]
  $region30: #{albert_mlm_head.2} parent=0
    _
  %s8 = ssub.s32 1, %s6
  %s9 = scalar_select 0, %s8, %s6
  // Predicated region
  $region2: #{albert_mlm_head.2} parent=0 // pred_check
    _
  $region3: #{albert_mlm_head.2} parent=0 // pred_check_branch
    %11 = sbr.rel (0) target = $region5
  $region4: #{albert_mlm_head.2} parent=0 // pred_region
    _
  $region5: #{albert_mlm_head.2} parent=0 // pred_fallthru
    _
  // Predicated region
  $region6: #{albert_mlm_head.2} parent=0 // pred_check
    _
  $region7: #{albert_mlm_head.2} parent=0 // pred_check_branch
    %13 = sbr.rel (0) target = $region9
  $region8: #{albert_mlm_head.2} parent=0 // pred_region
    _
  $region9: #{albert_mlm_head.2} parent=0 // pred_fallthru
    _
  // Predicated region
  $region10: #{albert_mlm_head.2} parent=0 // pred_check
    _
  $region11: #{albert_mlm_head.2} parent=0 // pred_check_branch
    %15 = sbr.rel (0) target = $region13
  $region12: #{albert_mlm_head.2} parent=0 // pred_region
    _
  $region13: #{albert_mlm_head.2} parent=0 // pred_fallthru
    _
  // Predicated region
  $region14: #{albert_mlm_head.2} parent=0 // pred_check
    _
  $region15: #{albert_mlm_head.2} parent=0 // pred_check_branch
    %17 = sbr.rel (0) target = $region17
  $region16: #{albert_mlm_head.2} parent=0 // pred_region
    _
  $region17: #{albert_mlm_head.2} parent=0 // pred_fallthru
    _
  // Predicated region
  $region18: #{albert_mlm_head.2} parent=0 // pred_check
    _
  $region19: #{albert_mlm_head.2} parent=0 // pred_check_branch
    %19 = sbr.rel (0) target = $region21
  $region20: #{albert_mlm_head.2} parent=0 // pred_region
    _
  $region21: #{albert_mlm_head.2} parent=0 // pred_fallthru
    _
  %v20 = vld [vmem:[%s0] sm:$0xff]
  %v21 = vld [vmem:[%s0 + $0x8] sm:$0xff]
  %v22 = vld [vmem:[%s1] sm:$0xff]
  %v23 = vld [vmem:[%s1 + $0x8] sm:$0xff]
  %v24 = vld [vmem:[%s1 + $0x10] sm:$0xff]
  %v25 = vld [vmem:[%s1 + $0x18] sm:$0xff]
  %v26 = vld [vmem:[%s2] sm:$0x1]
  %v28 = vperm.slane %v26, 0
  %vm30 = vcmask 261120
  %v32 = vsel %vm30, %v20, 0
  %v35 = vsel %vm30, %v21, 0
  %37 = vmatpush.msra.mxu0 0.0
  %38 = vmatpush.msra.mxu0 0.0
  %39 = vmatpush.msra.mxu0 0.0
  %40 = vmatpush.msra.mxu0 0.0
  %41 = vmatpush.msra.mxu0 0.0
  %42 = vmatpush.msra.mxu0 0.0
  %43 = vmatpush.msra.mxu0 0.0
  %44 = vmatpush.msra.mxu0 0.0
  %45 = vmatpush.msra.mxu0 0.0
  %46 = vmatpush.msra.mxu0 0.0
  %47 = vmatpush.msra.mxu0 0.0
  %48 = vmatpush.msra.mxu0 0.0
  %49 = vmatpush.msra.mxu0 %v25
  %50 = vmatpush.msra.mxu0 %v24
  %51 = vmatpush.msra.mxu0 %v23
  %52 = vmatpush.msra.mxu0 %v22
  %53 = vmatmul.f32.gmra.mxu0 %v32
  %v54 = vpop.f32.mrf.mxu0
  %v55 = vadd.f32 %v28, %v54
  %56 = vmatmul.f32.gmra.mxu0 %v35
  %v57 = vpop.f32.mrf.mxu0
  %v58 = vadd.f32 %v28, %v57
  %59 = vdwg.mxu0
  %v60 = vmul.f32 %v55, 0.5
  %v61 = vmul.f32 %v58, 0.5
  %v62 = vmul.f32 %v55, 0.044715
  %v63 = vmul.f32 %v58, 0.044715
  %v64 = vmul.f32 %v62, %v55
  %v65 = vmul.f32 %v63, %v58
  %v66 = vmul.f32 %v64, %v55
  %v67 = vmul.f32 %v65, %v58
  %v68 = vadd.f32 %v55, %v66
  %v69 = vadd.f32 %v58, %v67
  %v70 = vmul.f32 %v68, 0.7978846
  %v71 = vmul.f32 %v69, 0.7978846
  %v72 = vtanh.pop %v70
  %v73 = vtanh.pop %v71
  %v74 = vadd.f32 %v72, 1.0
  %v75 = vadd.f32 %v73, 1.0
  %v76 = vmul.f32 %v60, %v74
  %v77 = vmul.f32 %v61, %v75
  %vm78 = vcmask 130048
  %v79 = vsel %vm78, %v76, 0.0
  %80 = vadd.xlane.f32.xlu0 %v79
  %v81 = vpop.xlane.xlu0 %80
  %v82 = vsel %vm78, %v77, 0.0
  %83 = vadd.xlane.f32.xlu0 %v82
  %v84 = vpop.xlane.xlu0 %83
  %v85 = vrcp.pop 16.0
  %v86 = vmul.f32 16.0, %v85
  %v87 = vsub.f32 1.0, %v86
  %v88 = vmul.f32 %v85, %v87
  %v89 = vadd.f32 %v85, %v88
  %vm90 = vweird.f32 %v85
  %v91 = vsel %vm90, %v85, %v89
  %v92 = vmul.f32 %v81, %v91
  %v93 = vmul.f32 %v84, %v91
  %v94 = vsub.f32 %v76, %v92
  %v95 = vsub.f32 %v77, %v93
  %v96 = vmul.f32 %v94, %v94
  %v97 = vmul.f32 %v95, %v95
  %v98 = vsel %vm78, %v96, 0.0
  %99 = vadd.xlane.f32.xlu0 %v98
  %v100 = vpop.xlane.xlu0 %99
  %v101 = vsel %vm78, %v97, 0.0
  %102 = vadd.xlane.f32.xlu0 %v101
  %v103 = vpop.xlane.xlu0 %102
  %v104 = vmul.f32 %v100, %v91
  %v105 = vmul.f32 %v103, %v91
  %v106 = vadd.f32 %v104, 1e-05
  %v107 = vadd.f32 %v105, 1e-05
  %v108 = vrsqrt.pop %v106
  %v109 = vmul.f32 %v108, %v106
  %v110 = vmul.f32 %v109, %v108
  %v111 = vmul.f32 0.5, %v110
  %v112 = vsub.f32 1.5, %v111
  %v113 = vmul.f32 %v108, %v112
  %vm114 = vweird.f32 %v106
  %vm115 = vweird.f32 %v108
  %vm116 = vmor %vm114, %vm115
  %v117 = vsel %vm116, %v108, %v113
  %v118 = vrsqrt.pop %v107
  %v119 = vmul.f32 %v118, %v107
  %v120 = vmul.f32 %v119, %v118
  %v121 = vmul.f32 0.5, %v120
  %v122 = vsub.f32 1.5, %v121
  %v123 = vmul.f32 %v118, %v122
  %vm124 = vweird.f32 %v107
  %vm125 = vweird.f32 %v118
  %vm126 = vmor %vm124, %vm125
  %v127 = vsel %vm126, %v118, %v123
  %v128 = vmul.f32 %v94, %v117
  %v129 = vmul.f32 %v95, %v127
  %v130 = vld [vmem:[%s3] sm:$0x1]
  %v132 = vperm.slane %v130, 0
  %v134 = vmul.f32 %v128, %v132
  %v135 = vmul.f32 %v129, %v132
  %v136 = vld [vmem:[%s4] sm:$0x1]
  %v138 = vperm.slane %v136, 0
  %v140 = vadd.f32 %v134, %v138
  %v141 = vadd.f32 %v135, %v138
  %142 = vst.msk [vmem:[%s5] sm:$0xff] %vm78, %v140
  %143 = vst.msk [vmem:[%s5 + $0x8] sm:$0xff] %vm78, %v141
  // Predicated region
  $region22: #{albert_mlm_head.2} parent=0 // pred_check
    _
  $region23: #{albert_mlm_head.2} parent=0 // pred_check_branch
    %145 = sbr.rel (0) target = $region25
  $region24: #{albert_mlm_head.2} parent=0 // pred_region
    _
  $region25: #{albert_mlm_head.2} parent=0 // pred_fallthru
    _
  // Predicated region
  $region26: #{albert_mlm_head.2} parent=0 // pred_check
    _
  $region27: #{albert_mlm_head.2} parent=0 // pred_check_branch
    %147 = sbr.rel (0) target = $region29
  $region28: #{albert_mlm_head.2} parent=0 // pred_region
    _
  $region29: #{albert_mlm_head.2} parent=0 // pred_fallthru
    _

</llo_original>
